<compile_context>
chip_gen: v6e
topology: v6e:2x2x1
jax: 0.10.0
libtpu: 0.0.40
codegen_flags: <defaults>
</compile_context>

<pallas_src>
import functools
import math

import jax
import jax.numpy as jnp
from jax.experimental import pallas as pl
from jax.experimental.pallas import tpu as pltpu

_LANE = 128


def _focal_kernel(x_ref, t_ref, o_ref, *, alpha, gamma):
    """x_ref: (1, C, TS, 128) logits; t_ref: (1, TS, 128) int32 class ids
    (padded entries = -1); o_ref: (1, TS, 128) f32 per-element focal loss."""
    C = x_ref.shape[1]
    t = t_ref[0]                                          # (TS, 128) int32

    # max over classes -- elementwise across class slabs (pure VALU).
    m = x_ref[0, 0].astype(jnp.float32)
    for c in range(1, C):
        m = jnp.maximum(m, x_ref[0, c].astype(jnp.float32))

    # One pass: sum(exp(x - m)) plus the target-class shifted logit / exp.
    se = jnp.zeros_like(m)
    sh_t = jnp.zeros_like(m)
    e_t = jnp.zeros_like(m)
    for c in range(C):
        sh_c = x_ref[0, c].astype(jnp.float32) - m
        e_c = jnp.exp(sh_c)                               # EUP
        se = se + e_c
        sel = (t == c)
        sh_t = jnp.where(sel, sh_c, sh_t)
        e_t = jnp.where(sel, e_c, e_t)

    ce = jnp.log(se) - sh_t                               # cross-entropy
    pt = e_t / se                                         # == exp(-ce)

    omp = 1.0 - pt
    if gamma == 2.0:
        w = omp * omp
    elif gamma == 1.0:
        w = omp
    elif gamma == 0.0:
        w = jnp.ones_like(omp)
    else:
        w = jnp.power(jnp.maximum(omp, 0.0), jnp.float32(gamma))

    focal = jnp.float32(alpha) * w * ce
    # zero the padded pixels (their targets were padded with -1)
    o_ref[0] = jnp.where(t >= 0, focal, 0.0)


def focal_loss(inputs, targets, alpha=1.0, gamma=2.0, reduction='mean'):
    """inputs: (B, C, *spatial) or (N, C) logits; targets: matching int class ids."""
    inputs = jnp.asarray(inputs)
    targets = jnp.asarray(targets)

    if inputs.ndim == 2:
        # (N, C) logits, (N,) targets: treat samples as the "spatial" axis.
        logits = inputs.T[None]                           # (1, C, N)
        tgt = targets.reshape(1, -1)
    else:
        Bn, Cn = inputs.shape[0], inputs.shape[1]
        S = math.prod(inputs.shape[2:])
        logits = inputs.reshape(Bn, Cn, S)                # contiguous, free
        tgt = targets.reshape(Bn, S)

    B, C, S = logits.shape
    L = pl.cdiv(S, _LANE)

    # Tile rows per grid step, chosen from a fixed per-step VMEM budget
    # (logits + int32 targets + f32 output, 2-deep pipelining).
    in_bytes = jnp.dtype(inputs.dtype).itemsize
    bytes_per_row = _LANE * (C * in_bytes + 4 + 4)
    budget = 8 * 1024 * 1024
    ts_cap = max(8, ((budget // (2 * bytes_per_row)) // 8) * 8)
    if L <= ts_cap:
        TS, L_pad = L, L
    else:
        TS = ts_cap
        L_pad = pl.cdiv(L, TS) * TS
    S_pad = L_pad * _LANE
    G = L_pad // TS

    logits_p = jnp.pad(logits, ((0, 0), (0, 0), (0, S_pad - S)))
    tgt_p = jnp.pad(tgt.astype(jnp.int32), ((0, 0), (0, S_pad - S)),
                    constant_values=-1)
    x4 = logits_p.reshape(B, C, L_pad, _LANE)             # keep input dtype
    t3 = tgt_p.reshape(B, L_pad, _LANE)

    kernel = functools.partial(_focal_kernel, alpha=float(alpha),
                               gamma=float(gamma))

    focal = pl.pallas_call(
        kernel,
        out_shape=jax.ShapeDtypeStruct((B, L_pad, _LANE), jnp.float32),
        grid=(B, G),
        in_specs=[
            pl.BlockSpec((1, C, TS, _LANE), lambda b, i: (b, 0, i, 0)),
            pl.BlockSpec((1, TS, _LANE), lambda b, i: (b, i, 0)),
        ],
        out_specs=pl.BlockSpec((1, TS, _LANE), lambda b, i: (b, i, 0)),
        compiler_params=pltpu.CompilerParams(
            dimension_semantics=("parallel", "parallel"),
            vmem_limit_bytes=32 * 1024 * 1024),
    )(x4, t3)

    if reduction == 'mean':
        return jnp.sum(focal) / (B * S)
    elif reduction == 'sum':
        return jnp.sum(focal)
    else:  # 'none' -> per-element focal loss, same shape as targets
        return focal.reshape(B, S_pad)[:, :S].reshape(targets.shape)


def _ref_focal_loss(inputs, targets, alpha=1.0, gamma=2.0, reduction='mean'):
    """Pure-JAX reference mirroring the PyTorch forward."""
    if inputs.ndim == 2:
        logits = inputs
    else:
        logits = jnp.moveaxis(inputs, 1, -1)              # (B, *spatial, C)
    logp = jax.nn.log_softmax(logits.astype(jnp.float32), axis=-1)
    ce = -jnp.take_along_axis(logp, targets[..., None].astype(jnp.int32),
                              axis=-1)[..., 0]
    pt = jnp.exp(-ce)
    fl = alpha * (1.0 - pt) ** gamma * ce
    if reduction == 'mean':
        return jnp.mean(fl)
    if reduction == 'sum':
        return jnp.sum(fl)
    return fl


if __name__ == "__main__":
    key = jax.random.PRNGKey(0)
    k1, k2 = jax.random.split(key)
    B, C, H, W = 2, 4, 16, 16
    inputs = jax.random.normal(k1, (B, C, H, W), dtype=jnp.float32)
    targets = jax.random.randint(k2, (B, H, W), 0, C, dtype=jnp.int32)

    loss = focal_loss(inputs, targets, alpha=1.0, gamma=2.0, reduction='mean')
    loss = jax.block_until_ready(loss)

    ref = _ref_focal_loss(inputs, targets, alpha=1.0, gamma=2.0,
                          reduction='mean')
    assert jnp.allclose(loss, ref, rtol=1e-4, atol=1e-6), (loss, ref)
    print("KERNEL_OK")
</pallas_src>

<mosaic_0001>
module attributes {stable_mosaic.version = 11 : i64} {
  func.func @_focal_kernel(%arg0: i32, %arg1: i32, %arg2: memref<1x4x2x128xf32, #tpu.memory_space<vmem>>, %arg3: memref<1x2x128xi32, #tpu.memory_space<vmem>>, %arg4: memref<1x2x128xf32, #tpu.memory_space<vmem>>) attributes {dimension_semantics = [#tpu.dimension_semantics<parallel>, #tpu.dimension_semantics<parallel>], iteration_bounds = array<i64: 2, 1>, scalar_prefetch = 0 : i64, scratch_operands = 0 : i64, tpu.core_type = #tpu.core_type<tc>, window_params = [{transform_indices = @transform_0, window_bounds = array<i64: 1, 4, 2, 128>}, {transform_indices = @transform_1, window_bounds = array<i64: 1, 2, 128>}, {transform_indices = @transform_2, window_bounds = array<i64: 1, 2, 128>}]} {
    %c0 = arith.constant 0 : index
    %c0_0 = arith.constant 0 : index
    %c0_1 = arith.constant 0 : index
    %0 = vector.load %arg3[%c0, %c0_0, %c0_1] : memref<1x2x128xi32, #tpu.memory_space<vmem>>, vector<1x2x128xi32>
    %1 = vector.shape_cast %0 : vector<1x2x128xi32> to vector<2x128xi32>
    %c0_2 = arith.constant 0 : index
    %c0_3 = arith.constant 0 : index
    %c0_4 = arith.constant 0 : index
    %c0_5 = arith.constant 0 : index
    %2 = vector.load %arg2[%c0_2, %c0_3, %c0_4, %c0_5] : memref<1x4x2x128xf32, #tpu.memory_space<vmem>>, vector<1x1x2x128xf32>
    %3 = vector.shape_cast %2 : vector<1x1x2x128xf32> to vector<2x128xf32>
    %c0_6 = arith.constant 0 : index
    %c1 = arith.constant 1 : index
    %c0_7 = arith.constant 0 : index
    %c0_8 = arith.constant 0 : index
    %4 = vector.load %arg2[%c0_6, %c1, %c0_7, %c0_8] : memref<1x4x2x128xf32, #tpu.memory_space<vmem>>, vector<1x1x2x128xf32>
    %5 = vector.shape_cast %4 : vector<1x1x2x128xf32> to vector<2x128xf32>
    %6 = arith.maximumf %3, %5 : vector<2x128xf32>
    %c0_9 = arith.constant 0 : index
    %c2 = arith.constant 2 : index
    %c0_10 = arith.constant 0 : index
    %c0_11 = arith.constant 0 : index
    %7 = vector.load %arg2[%c0_9, %c2, %c0_10, %c0_11] : memref<1x4x2x128xf32, #tpu.memory_space<vmem>>, vector<1x1x2x128xf32>
    %8 = vector.shape_cast %7 : vector<1x1x2x128xf32> to vector<2x128xf32>
    %9 = arith.maximumf %6, %8 : vector<2x128xf32>
    %c0_12 = arith.constant 0 : index
    %c3 = arith.constant 3 : index
    %c0_13 = arith.constant 0 : index
    %c0_14 = arith.constant 0 : index
    %10 = vector.load %arg2[%c0_12, %c3, %c0_13, %c0_14] : memref<1x4x2x128xf32, #tpu.memory_space<vmem>>, vector<1x1x2x128xf32>
    %11 = vector.shape_cast %10 : vector<1x1x2x128xf32> to vector<2x128xf32>
    %12 = arith.maximumf %9, %11 : vector<2x128xf32>
    %cst = arith.constant 0.000000e+00 : f32
    %13 = vector.broadcast %cst : f32 to vector<2x128xf32>
    %cst_15 = arith.constant 0.000000e+00 : f32
    %14 = vector.broadcast %cst_15 : f32 to vector<2x128xf32>
    %cst_16 = arith.constant 0.000000e+00 : f32
    %15 = vector.broadcast %cst_16 : f32 to vector<2x128xf32>
    %c0_17 = arith.constant 0 : index
    %c0_18 = arith.constant 0 : index
    %c0_19 = arith.constant 0 : index
    %c0_20 = arith.constant 0 : index
    %16 = vector.load %arg2[%c0_17, %c0_18, %c0_19, %c0_20] : memref<1x4x2x128xf32, #tpu.memory_space<vmem>>, vector<1x1x2x128xf32>
    %17 = vector.shape_cast %16 : vector<1x1x2x128xf32> to vector<2x128xf32>
    %18 = arith.subf %17, %12 : vector<2x128xf32>
    %19 = math.exp %18 : vector<2x128xf32>
    %20 = arith.addf %13, %19 : vector<2x128xf32>
    %c0_i32 = arith.constant 0 : i32
    %21 = vector.broadcast %c0_i32 : i32 to vector<2x128xi32>
    %22 = arith.cmpi eq, %1, %21 : vector<2x128xi32>
    %23 = arith.select %22, %18, %14 : vector<2x128xi1>, vector<2x128xf32>
    %24 = arith.select %22, %19, %15 : vector<2x128xi1>, vector<2x128xf32>
    %c0_21 = arith.constant 0 : index
    %c1_22 = arith.constant 1 : index
    %c0_23 = arith.constant 0 : index
    %c0_24 = arith.constant 0 : index
    %25 = vector.load %arg2[%c0_21, %c1_22, %c0_23, %c0_24] : memref<1x4x2x128xf32, #tpu.memory_space<vmem>>, vector<1x1x2x128xf32>
    %26 = vector.shape_cast %25 : vector<1x1x2x128xf32> to vector<2x128xf32>
    %27 = arith.subf %26, %12 : vector<2x128xf32>
    %28 = math.exp %27 : vector<2x128xf32>
    %29 = arith.addf %20, %28 : vector<2x128xf32>
    %c1_i32 = arith.constant 1 : i32
    %30 = vector.broadcast %c1_i32 : i32 to vector<2x128xi32>
    %31 = arith.cmpi eq, %1, %30 : vector<2x128xi32>
    %32 = arith.select %31, %27, %23 : vector<2x128xi1>, vector<2x128xf32>
    %33 = arith.select %31, %28, %24 : vector<2x128xi1>, vector<2x128xf32>
    %c0_25 = arith.constant 0 : index
    %c2_26 = arith.constant 2 : index
    %c0_27 = arith.constant 0 : index
    %c0_28 = arith.constant 0 : index
    %34 = vector.load %arg2[%c0_25, %c2_26, %c0_27, %c0_28] : memref<1x4x2x128xf32, #tpu.memory_space<vmem>>, vector<1x1x2x128xf32>
    %35 = vector.shape_cast %34 : vector<1x1x2x128xf32> to vector<2x128xf32>
    %36 = arith.subf %35, %12 : vector<2x128xf32>
    %37 = math.exp %36 : vector<2x128xf32>
    %38 = arith.addf %29, %37 : vector<2x128xf32>
    %c2_i32 = arith.constant 2 : i32
    %39 = vector.broadcast %c2_i32 : i32 to vector<2x128xi32>
    %40 = arith.cmpi eq, %1, %39 : vector<2x128xi32>
    %41 = arith.select %40, %36, %32 : vector<2x128xi1>, vector<2x128xf32>
    %42 = arith.select %40, %37, %33 : vector<2x128xi1>, vector<2x128xf32>
    %c0_29 = arith.constant 0 : index
    %c3_30 = arith.constant 3 : index
    %c0_31 = arith.constant 0 : index
    %c0_32 = arith.constant 0 : index
    %43 = vector.load %arg2[%c0_29, %c3_30, %c0_31, %c0_32] : memref<1x4x2x128xf32, #tpu.memory_space<vmem>>, vector<1x1x2x128xf32>
    %44 = vector.shape_cast %43 : vector<1x1x2x128xf32> to vector<2x128xf32>
    %45 = arith.subf %44, %12 : vector<2x128xf32>
    %46 = math.exp %45 : vector<2x128xf32>
    %47 = arith.addf %38, %46 : vector<2x128xf32>
    %c3_i32 = arith.constant 3 : i32
    %48 = vector.broadcast %c3_i32 : i32 to vector<2x128xi32>
    %49 = arith.cmpi eq, %1, %48 : vector<2x128xi32>
    %50 = arith.select %49, %45, %41 : vector<2x128xi1>, vector<2x128xf32>
    %51 = arith.select %49, %46, %42 : vector<2x128xi1>, vector<2x128xf32>
    %52 = math.log %47 : vector<2x128xf32>
    %53 = arith.subf %52, %50 : vector<2x128xf32>
    %54 = arith.divf %51, %47 : vector<2x128xf32>
    %cst_33 = arith.constant 1.000000e+00 : f32
    %55 = vector.broadcast %cst_33 : f32 to vector<2x128xf32>
    %56 = arith.subf %55, %54 : vector<2x128xf32>
    %57 = arith.mulf %56, %56 : vector<2x128xf32>
    %cst_34 = arith.constant 1.000000e+00 : f32
    %58 = vector.broadcast %cst_34 : f32 to vector<2x128xf32>
    %59 = arith.mulf %58, %57 : vector<2x128xf32>
    %60 = arith.mulf %59, %53 : vector<2x128xf32>
    %c0_i32_35 = arith.constant 0 : i32
    %61 = vector.broadcast %c0_i32_35 : i32 to vector<2x128xi32>
    %62 = arith.cmpi sge, %1, %61 : vector<2x128xi32>
    %cst_36 = arith.constant 0.000000e+00 : f32
    %63 = vector.broadcast %cst_36 : f32 to vector<2x128xf32>
    %64 = arith.select %62, %60, %63 : vector<2x128xi1>, vector<2x128xf32>
    %c0_37 = arith.constant 0 : index
    %c0_38 = arith.constant 0 : index
    %c0_39 = arith.constant 0 : index
    %65 = vector.load %arg4[%c0_37, %c0_38, %c0_39] : memref<1x2x128xf32, #tpu.memory_space<vmem>>, vector<1x2x128xf32>
    %66 = vector.shape_cast %65 : vector<1x2x128xf32> to vector<2x128xf32>
    %67 = vector.shape_cast %64 : vector<2x128xf32> to vector<1x2x128xf32>
    tpu.vector_store %arg4[%c0_37, %c0_38, %c0_39], %67 {strides = array<i32>} : memref<1x2x128xf32, #tpu.memory_space<vmem>>, vector<1x2x128xf32>,
    return
  }
  func.func @transform_0(%arg0: i32, %arg1: i32) -> (i32, i32, i32, i32) {
    %c0_i32 = arith.constant 0 : i32
    %c0_i32_0 = arith.constant 0 : i32
    %c0_i32_1 = arith.constant 0 : i32
    return %arg0, %c0_i32, %arg1, %c0_i32_0 : i32, i32, i32, i32
  }
  func.func @transform_1(%arg0: i32, %arg1: i32) -> (i32, i32, i32) {
    %c0_i32 = arith.constant 0 : i32
    %c0_i32_0 = arith.constant 0 : i32
    return %arg0, %arg1, %c0_i32 : i32, i32, i32
  }
  func.func @transform_2(%arg0: i32, %arg1: i32) -> (i32, i32, i32) {
    %c0_i32 = arith.constant 0 : i32
    %c0_i32_0 = arith.constant 0 : i32
    return %arg0, %arg1, %c0_i32 : i32, i32, i32
  }
}

</mosaic_0001>

<llo_original>
// kernel: tpu_custom_call.1
$region0: #{tpu_custom_call.1}
  #allocation0 [shape = 'u32[]', space=smem, size = 0x4, offset = 0x4, fixed_abs, tag = 'smem constant byte address 0x4 - core index']
  #allocation1 [shape = 'u32[144,128]{1,0:T(1,128)}', space=vmem, size = 0x12000, scoped, tag = 'internal scratch']
  %s0 = inlined_call_operand.hbm [shape: f32[2,4,2,128], index: 0, kind: input, shape index: {}]
  %s1 = inlined_call_operand.hbm [shape: s32[2,2,128], index: 1, kind: input, shape index: {}]
  %s2 = inlined_call_operand.hbm [shape: f32[2,2,128], index: 2, kind: output, shape index: {}]
  %s3 = sld [smem:[#allocation0]]
  $region49: #{tpu_custom_call.1} parent=0
    _
  %s5 = ssub.s32 1, %s3
  %s6 = scalar_select 0, %s5, %s3
  $region1: #{tpu_custom_call.1} parent=0
    #allocation2 [shape = 'u8[8192]{0}', space=vmem, size = 0x2000, scoped, tag = 'input window, operand 0']
    #allocation3 [shape = 's32[2]{0}', space=sflag, size = 0x8, scoped, tag = 'scoped memory for tpu_custom_call.1']
    #allocation4 [shape = 's32[2]{0}', space=sflag, size = 0x8, scoped, tag = 'scoped memory for tpu_custom_call.1']
    #allocation5 [shape = 'u8[2048]{0}', space=vmem, size = 0x800, scoped, tag = 'input window, operand 1']
    #allocation6 [shape = 's32[2]{0}', space=sflag, size = 0x8, scoped, tag = 'scoped memory for tpu_custom_call.1']
    #allocation7 [shape = 'u8[2048]{0}', space=vmem, size = 0x800, scoped, tag = 'output window, operand 0']
    %7 = vsyncpa [#allocation3], 0
    %s8 = scalar_lea.sflag [#allocation3], 1
    %9 = vsyncpa %s8, 0
    %10 = vsyncpa [#allocation6], 0
    %s11 = scalar_lea.sflag [#allocation6], 1
    %12 = vsyncpa %s11, 0
    %13 = vsyncpa [#allocation4], 0
    %s14 = scalar_lea.sflag [#allocation4], 1
    %15 = vsyncpa %s14, 0
    loop: start=0, step=1, limit=4
    $region2: #{tpu_custom_call.1} parent=1 // loop_pre_header
      _
    $region3: #{tpu_custom_call.1} parent=1 // loop_header
      %s17 = sphi 0, %s21
      %p18 = scmp.ge.s32.totalorder %s17, 4
      %s24 = sphi 0, %s36
      %s25 = sphi 0, %s32
      %s26 = sphi 0, %s24
      %s27 = sphi 0, %s25
      %s28 = sphi 0, %s26
      %s29 = sphi 0, %s27
      %s41 = sphi 0, %s43
      %s44 = sphi 0, %s41
      %s45 = sphi 0, %s44
      %s61 = sphi 0, %s45
      %s69 = sphi 0, %s71
      %s72 = sphi 0, %s69
      %s73 = sphi 0, %s72
      %s89 = sphi 0, %s73
      %s97 = sphi 0, %s99
      %s100 = sphi 0, %s97
      %s101 = sphi 0, %s100
      %s117 = sphi 0, %s101
    $region4: #{tpu_custom_call.1} parent=1 // loop_header_branch
      %20 = sbr.rel (%p18) target = $region8
    $region5: #{tpu_custom_call.1} parent=1 // loop_body
      %s22 = ssub.s32 %s17, 1
      %s23 = ssub.s32 %s17, 2
      %s30 = sadd.s32 1, %s25
      %p31 = scmp.ge.s32.totalorder %s30, 1
      %s32 = scalar_select %p31, 0, %s30
      %s33 = sadd.s32 1, %s24
      %s34 = scalar_select %p31, %s33, %s24
      %p35 = scmp.ge.s32.totalorder %s34, 2
      %s36 = scalar_select %p35, 0, %s34
      %s37 = ssub.s32 %s24, %s36
      %s38 = ssub.s32 %s25, %s32
      %s39 = sor.u32 %s37, %s38
      %p40 = scmp.eq.s32.totalorder %s39, 0
      %s42 = sadd.s32 %s41, 1
      %s43 = scalar_select %p40, %s41, %s42
      %p46 = pneg %p40
      %p47 = scmp.eq.s32.totalorder %s17, 1
      %p48 = por %p46, %p47
      %p49 = scmp.ne.s32.totalorder %s41, %s44
      %p50 = scmp.eq.s32.totalorder %s17, 0
      %p51 = por %p49, %p50
      %p52 = scmp.ne.s32.totalorder %s41, %s44
      %p53 = scmp.eq.s32.totalorder %s22, 1
      %p54 = por %p52, %p53
      %p55 = scmp.ne.s32.totalorder %s44, %s45
      %p56 = scmp.eq.s32.totalorder %s22, 0
      %p57 = por %p55, %p56
      %p58 = scmp.ne.s32.totalorder %s44, %s45
      %p59 = scmp.eq.s32.totalorder %s23, 1
      %p60 = por %p58, %p59
      %p62 = scmp.ne.s32.totalorder %s45, %s61
      %p63 = scmp.eq.s32.totalorder %s23, 0
      %p64 = por %p62, %p63
      %s65 = ssub.s32 %s24, %s36
      %s66 = ssub.s32 %s25, %s32
      %s67 = sor.u32 %s65, %s66
      %p68 = scmp.eq.s32.totalorder %s67, 0
      %s70 = sadd.s32 %s69, 1
      %s71 = scalar_select %p68, %s69, %s70
      %p74 = pneg %p68
      %p75 = scmp.eq.s32.totalorder %s17, 1
      %p76 = por %p74, %p75
      %p77 = scmp.ne.s32.totalorder %s69, %s72
      %p78 = scmp.eq.s32.totalorder %s17, 0
      %p79 = por %p77, %p78
      %p80 = scmp.ne.s32.totalorder %s69, %s72
      %p81 = scmp.eq.s32.totalorder %s22, 1
      %p82 = por %p80, %p81
      %p83 = scmp.ne.s32.totalorder %s72, %s73
      %p84 = scmp.eq.s32.totalorder %s22, 0
      %p85 = por %p83, %p84
      %p86 = scmp.ne.s32.totalorder %s72, %s73
      %p87 = scmp.eq.s32.totalorder %s23, 1
      %p88 = por %p86, %p87
      %p90 = scmp.ne.s32.totalorder %s73, %s89
      %p91 = scmp.eq.s32.totalorder %s23, 0
      %p92 = por %p90, %p91
      %s93 = ssub.s32 %s24, %s36
      %s94 = ssub.s32 %s25, %s32
      %s95 = sor.u32 %s93, %s94
      %p96 = scmp.eq.s32.totalorder %s95, 0
      %s98 = sadd.s32 %s97, 1
      %s99 = scalar_select %p96, %s97, %s98
      %p102 = pneg %p96
      %p103 = scmp.eq.s32.totalorder %s17, 1
      %p104 = por %p102, %p103
      %p105 = scmp.ne.s32.totalorder %s97, %s100
      %p106 = scmp.eq.s32.totalorder %s17, 0
      %p107 = por %p105, %p106
      %p108 = scmp.ne.s32.totalorder %s97, %s100
      %p109 = scmp.eq.s32.totalorder %s22, 1
      %p110 = por %p108, %p109
      %p111 = scmp.ne.s32.totalorder %s100, %s101
      %p112 = scmp.eq.s32.totalorder %s22, 0
      %p113 = por %p111, %p112
      %p114 = scmp.ne.s32.totalorder %s100, %s101
      %p115 = scmp.eq.s32.totalorder %s23, 1
      %p116 = por %p114, %p115
      %p118 = scmp.ne.s32.totalorder %s101, %s117
      %p119 = scmp.eq.s32.totalorder %s23, 0
      %p120 = por %p118, %p119
      %p121 = scmp.le.s32.totalorder 1, %s17
      %p122 = scmp.lt.s32.totalorder %s17, 3
      %p123 = pnand %p121, %p122
      %p124 = pneg %p123
      // Predicated region
      $region9: #{tpu_custom_call.1} parent=5 // pred_check
        _
      $region10: #{tpu_custom_call.1} parent=5 // pred_check_branch
        %126 = sbr.rel (%p123) target = $region12
      $region11: #{tpu_custom_call.1} parent=5 // pred_region
        %s127 = ssub.s32 %s17, 1
      $region12: #{tpu_custom_call.1} parent=5 // pred_fallthru
        _
      %p128 = scmp.lt.s32.totalorder %s17, 2
      // Predicated region
      $region13: #{tpu_custom_call.1} parent=5 // pred_check
        %p129 = pneg %p128
      $region14: #{tpu_custom_call.1} parent=5 // pred_check_branch
        %131 = sbr.rel (%p129) target = $region16
      $region15: #{tpu_custom_call.1} parent=5 // pred_region
        // Predicated region
        $region17: #{tpu_custom_call.1} parent=15 // pred_check
          %p132 = pneg %p51
        $region18: #{tpu_custom_call.1} parent=15 // pred_check_branch
          %134 = sbr.rel (%p132) target = $region20
        $region19: #{tpu_custom_call.1} parent=15 // pred_region
          %s135 = sand.u32 %s41, 1
          %s136 = scalar_lea.sflag [#allocation3], %s135
          %s137 = sand.u32 %s41, 1
          %s138 = smul.addr %s137, 8
          %s139 = scalar_lea.vmem [#allocation2], %s138
          %s141 = ssub.s32 128, 128
          %142 = vsyncadd %s136, %s141
          %s143 = smul.addr %s24, 4
          %s144 = sadd.s32 %s25, %s143
          %s145 = smul.addr %s144, 32
          %s146 = scalar_lea.hbm %s0, %s145
          %s147 = sshll.u32 %s139, 4
          %s148 = int_to_ptr.vmem [resolvable:$true] %s147
          %153 = dma.hbm_to_vmem [thread:$0]  %s146, 128, %s148, %s136, 32, 32, 2
        $region20: #{tpu_custom_call.1} parent=15 // pred_fallthru
          _
        // Predicated region
        $region21: #{tpu_custom_call.1} parent=15 // pred_check
          %p154 = pneg %p79
        $region22: #{tpu_custom_call.1} parent=15 // pred_check_branch
          %156 = sbr.rel (%p154) target = $region24
        $region23: #{tpu_custom_call.1} parent=15 // pred_region
          %s157 = sand.u32 %s69, 1
          %s158 = scalar_lea.sflag [#allocation6], %s157
          %s159 = sand.u32 %s69, 1
          %s160 = smul.addr %s159, 2
          %s161 = scalar_lea.vmem [#allocation5], %s160
          %s163 = ssub.s32 32, 32
          %164 = vsyncadd %s158, %s163
          %s165 = sadd.s32 %s25, %s24
          %s166 = smul.addr %s165, 32
          %s167 = scalar_lea.hbm %s1, %s166
          %s169 = sshll.u32 %s161, 4
          %s170 = int_to_ptr.vmem [resolvable:$true] %s169
          %172 = dma.hbm_to_vmem [thread:$0]  %s167, 32, %s170, %s158
        $region24: #{tpu_custom_call.1} parent=15 // pred_fallthru
          _
      $region16: #{tpu_custom_call.1} parent=5 // pred_fallthru
        _
      %p173 = scmp.le.s32.totalorder 1, %s17
      %p174 = scmp.lt.s32.totalorder %s17, 3
      %p175 = pnand %p173, %p174
      %p176 = pneg %p175
      // Predicated region
      $region25: #{tpu_custom_call.1} parent=5 // pred_check
        _
      $region26: #{tpu_custom_call.1} parent=5 // pred_check_branch
        %178 = sbr.rel (%p175) target = $region28
      $region27: #{tpu_custom_call.1} parent=5 // pred_region
        %s179 = ssub.s32 %s17, 1
        %s180 = sand.u32 %s44, 1
        %s181 = scalar_lea.sflag [#allocation3], %s180
        %s182 = sand.u32 %s44, 1
        %s183 = smul.addr %s182, 8
        %s184 = scalar_lea.vmem [#allocation2], %s183
        // Predicated region
        $region29: #{tpu_custom_call.1} parent=27 // pred_check
          %p185 = pneg %p57
        $region30: #{tpu_custom_call.1} parent=27 // pred_check_branch
          %187 = sbr.rel (%p185) target = $region32
        $region31: #{tpu_custom_call.1} parent=27 // pred_region
          %188 = dma.done %s181, 128
        $region32: #{tpu_custom_call.1} parent=27 // pred_fallthru
          _
        %s189 = sand.u32 %s72, 1
        %s190 = scalar_lea.sflag [#allocation6], %s189
        %s191 = sand.u32 %s72, 1
        %s192 = smul.addr %s191, 2
        %s193 = scalar_lea.vmem [#allocation5], %s192
        // Predicated region
        $region33: #{tpu_custom_call.1} parent=27 // pred_check
          %p194 = pneg %p85
        $region34: #{tpu_custom_call.1} parent=27 // pred_check_branch
          %196 = sbr.rel (%p194) target = $region36
        $region35: #{tpu_custom_call.1} parent=27 // pred_region
          %197 = dma.done %s190, 32
        $region36: #{tpu_custom_call.1} parent=27 // pred_fallthru
          _
        %s198 = sand.u32 %s44, 1
        %s199 = scalar_lea.sflag [#allocation3], %s198
        %s200 = sand.u32 %s44, 1
        %s201 = smul.addr %s200, 8
        %s202 = scalar_lea.vmem [#allocation2], %s201
        %p203 = pneg %p57
        %p204 = pneg %p54
        %s205 = sand.u32 %s72, 1
        %s206 = scalar_lea.sflag [#allocation6], %s205
        %s207 = sand.u32 %s72, 1
        %s208 = smul.addr %s207, 2
        %s209 = scalar_lea.vmem [#allocation5], %s208
        %p210 = pneg %p85
        %p211 = pneg %p82
        %p212 = pneg %p113
        %p213 = pneg %p110
        %s214 = sand.u32 %s100, 1
        %s215 = scalar_lea.sflag [#allocation4], %s214
        %s216 = sand.u32 %s100, 1
        %s217 = smul.addr %s216, 2
        %s218 = scalar_lea.vmem [#allocation7], %s217
        %v219 = vld [vmem:[%s193] sm:$0x3]
        %v220 = vld [vmem:[%s184] sm:$0x3]
        %s221 = scalar_lea.vmem %s184, 2 [#allocation2]
        %v222 = vld [vmem:[%s221] sm:$0x3]
        %v223 = vmax.f32 %v220, %v222
        %s224 = scalar_lea.vmem %s184, 4 [#allocation2]
        %v225 = vld [vmem:[%s224] sm:$0x3]
        %v226 = vmax.f32 %v223, %v225
        %s227 = scalar_lea.vmem %s184, 6 [#allocation2]
        %v228 = vld [vmem:[%s227] sm:$0x3]
        %v229 = vmax.f32 %v226, %v228
        %v230 = vsub.f32 %v220, %v229
        %v231 = vmul.f32 %v230, 1.442695
        %v232 = vpow.pop %v231
        %v233 = vadd.f32 %v232, 0.0
        %vm234 = vcmp.eq.s32.totalorder %v219, 0
        %v235 = vsel %vm234, %v230, 0.0
        %v236 = vsel %vm234, %v232, 0.0
        %v237 = vsub.f32 %v222, %v229
        %v238 = vmul.f32 %v237, 1.442695
        %v239 = vpow.pop %v238
        %v240 = vadd.f32 %v233, %v239
        %vm241 = vcmp.eq.s32.totalorder %v219, 1
        %v242 = vsel %vm241, %v237, %v235
        %v243 = vsel %vm241, %v239, %v236
        %v244 = vsub.f32 %v225, %v229
        %v245 = vmul.f32 %v244, 1.442695
        %v246 = vpow.pop %v245
        %v247 = vadd.f32 %v240, %v246
        %vm248 = vcmp.eq.s32.totalorder %v219, 2
        %v249 = vsel %vm248, %v244, %v242
        %v250 = vsel %vm248, %v246, %v243
        %v251 = vsub.f32 %v228, %v229
        %v252 = vmul.f32 %v251, 1.442695
        %v253 = vpow.pop %v252
        %v254 = vadd.f32 %v247, %v253
        %vm255 = vcmp.eq.s32.totalorder %v219, 3
        %v256 = vsel %vm255, %v251, %v249
        %v257 = vsel %vm255, %v253, %v250
        %v258 = vlog2.pop %v254
        %v259 = vmul.f32 %v258, 0.6931472
        %v260 = vsub.f32 %v259, %v256
        %v261 = vrcp.pop %v254
        %v262 = vmul.f32 %v257, %v261
        %v263 = vsub.f32 1.0, %v262
        %v264 = vmul.f32 %v263, %v263
        %v265 = vmul.f32 %v264, %v260
        %vm266 = vcmp.ge.s32.totalorder %v219, 0
        %v267 = vsel %vm266, %v265, 0.0
        %268 = vst [vmem:[%s218] sm:$0x3] %v267
        %s269 = sand.u32 %s100, 1
        %s270 = scalar_lea.sflag [#allocation4], %s269
        %s271 = sand.u32 %s100, 1
        %s272 = smul.addr %s271, 2
        %s273 = scalar_lea.vmem [#allocation7], %s272
        // Predicated region
        $region37: #{tpu_custom_call.1} parent=27 // pred_check
          %p274 = pneg %p110
        $region38: #{tpu_custom_call.1} parent=27 // pred_check_branch
          %276 = sbr.rel (%p274) target = $region40
        $region39: #{tpu_custom_call.1} parent=27 // pred_region
          %s278 = ssub.s32 32, 32
          %279 = vsyncadd %s270, %s278
          %s280 = sadd.s32 %s27, %s26
          %s281 = smul.addr %s280, 32
          %s282 = scalar_lea.hbm %s2, %s281
          %s284 = sshll.u32 %s273, 4
          %s285 = int_to_ptr.vmem [resolvable:$true] %s284
          %287 = dma.vmem_to_hbm [thread:$0]  %s285, 32, %s282, %s270
        $region40: #{tpu_custom_call.1} parent=27 // pred_fallthru
          _
      $region28: #{tpu_custom_call.1} parent=5 // pred_fallthru
        _
      %p288 = scmp.le.s32.totalorder 2, %s17
      // Predicated region
      $region41: #{tpu_custom_call.1} parent=5 // pred_check
        %p289 = pneg %p288
      $region42: #{tpu_custom_call.1} parent=5 // pred_check_branch
        %291 = sbr.rel (%p289) target = $region44
      $region43: #{tpu_custom_call.1} parent=5 // pred_region
        %s292 = ssub.s32 %s17, 2
        // Predicated region
        $region45: #{tpu_custom_call.1} parent=43 // pred_check
          %p293 = pneg %p116
        $region46: #{tpu_custom_call.1} parent=43 // pred_check_branch
          %295 = sbr.rel (%p293) target = $region48
        $region47: #{tpu_custom_call.1} parent=43 // pred_region
          %s296 = sand.u32 %s101, 1
          %s297 = scalar_lea.sflag [#allocation4], %s296
          %s298 = sand.u32 %s101, 1
          %s299 = smul.addr %s298, 2
          %s300 = scalar_lea.vmem [#allocation7], %s299
          %301 = dma.done %s297, 32
        $region48: #{tpu_custom_call.1} parent=43 // pred_fallthru
          _
      $region44: #{tpu_custom_call.1} parent=5 // pred_fallthru
        _
    $region6: #{tpu_custom_call.1} parent=1 // loop_footer
      %s21 = sadd.s32 1, %s17
    $region7: #{tpu_custom_call.1} parent=1 // loop_footer_branch
      %16 = sbr.rel target = $region3
    $region8: #{tpu_custom_call.1} parent=1 // loop_exit
      _
    %302 = vsyncpa [#allocation3], 1
    %s303 = scalar_lea.sflag [#allocation3], 1
    %304 = vsyncpa %s303, 1
    %305 = vsyncpa [#allocation6], 1
    %s306 = scalar_lea.sflag [#allocation6], 1
    %307 = vsyncpa %s306, 1
    %308 = vsyncpa [#allocation4], 1
    %s309 = scalar_lea.sflag [#allocation4], 1
    %310 = vsyncpa %s309, 1

</llo_original>
